<compile_context>
chip_gen: v7x
topology: tpu7x:2x2x1
jax: 0.10.0
libtpu: 0.0.40
codegen_flags: <defaults>
</compile_context>

<pallas_src>
import functools
import math

import jax
import jax.numpy as jnp
from jax.experimental import pallas as pl
from jax.experimental.pallas import tpu as pltpu


# ----------------------------- kernels ------------------------------------- #

def _diffuse_kernel(sa_ref, sb_ref, x_ref, n_ref, o_ref, *, tb, nrows):
    # sa_ref/sb_ref: VMEM (R, 1) f32, resident for the whole call.
    # x_ref/n_ref:   VMEM (TB, TN) in native dtypes; o_ref: (TB, TN) x.dtype.
    if nrows == 1:
        sa = sa_ref[...]
        sb = sb_ref[...]
    else:
        r0 = pl.multiple_of(pl.program_id(0) * tb, tb)   # tb is a multiple of 8
        sa = sa_ref[pl.ds(r0, tb), :]
        sb = sb_ref[pl.ds(r0, tb), :]
    # f32 promotion on load (sa/sb are f32), single rounding on store.
    o_ref[...] = (sa * x_ref[...] + sb * n_ref[...]).astype(o_ref.dtype)


def _scale_only_kernel(sa_ref, x_ref, o_ref, *, tb, nrows):
    # Specialized noise=None path: out = sqrt(a) * x (no zero stream).
    if nrows == 1:
        sa = sa_ref[...]
    else:
        r0 = pl.multiple_of(pl.program_id(0) * tb, tb)
        sa = sa_ref[pl.ds(r0, tb), :]
    o_ref[...] = (sa * x_ref[...]).astype(o_ref.dtype)


# --------------------------- tiling helpers --------------------------------- #

def _largest_divisor_multiple(dim, quantum, cap):
    """Largest d with d | dim, d % quantum == 0, d <= cap; None if none exists."""
    best = None
    limit = min(dim, cap)
    for cand in range(quantum, limit + 1, quantum):
        if dim % cand == 0:
            best = cand
    return best


def _pick_fold(B, N_total, q):
    """Smallest k with k | N_total and (B*k) % q == 0 (fold spatial into rows)."""
    if B % q == 0 or N_total <= 1:
        return 1
    k0 = q // math.gcd(B, q)
    k = k0
    limit = min(N_total, 16384)
    while k <= limit:
        if N_total % k == 0:
            return k
        k += k0
    return 1


def _pick_tiles(R, Npad, itemsize, q):
    # Row tile: multiple of q dividing R (cap 256 rows), else full extent.
    tb = _largest_divisor_multiple(R, q, 256)
    if tb is None:
        tb = R
    # Col tile: multiple of 128 dividing Npad, sized so one streamed input
    # buffer is ~<= 4 MiB (3 slabs x double-buffer ~= 24 MiB live).
    budget_elems = (4 << 20) // itemsize
    cap = max(128, (budget_elems // max(tb, 1)) // 128 * 128)
    tn = _largest_divisor_multiple(Npad, 128, cap)
    if tn is None:
        tn = Npad  # full-extent block is always legal
    return tb, tn


# ------------------------------ wrapper ------------------------------------- #

def diffusion_forward(x, t, betas=None, noise=None, alpha_bar=None):
    """Pallas equivalent of Diffusion.forward.

    Args:
      x:         (B, C, H, W) (or (B, ...)) float array.
      t:         (B,) integer timesteps (indices into the schedule).
      betas:     (num_timesteps,) schedule; used only if alpha_bar is None.
      noise:     optional array with the same shape as x; None -> 0.
      alpha_bar: optional precomputed cumprod(1 - betas); pass this when
                 calling repeatedly (e.g. inside a sampling loop).
    """
    if alpha_bar is None:
        if betas is None:
            raise ValueError("provide betas or alpha_bar")
        alpha_bar = jnp.cumprod(1.0 - betas.astype(jnp.float32))

    orig_shape = x.shape
    B = orig_shape[0]
    N_total = int(math.prod(orig_shape[1:])) if len(orig_shape) > 1 else 1
    itemsize = jnp.dtype(x.dtype).itemsize
    q = max(8, 32 // itemsize)               # dtype-aware sublane quantum

    # Row folding: (B, N_total) -> (R, N) = (B*k, N_total//k), free reshape.
    k = _pick_fold(B, N_total, q)
    R = B * k
    N = N_total // k

    # Hoisted per-row scales (tiny glue in plain JAX).
    a_t = alpha_bar[t.astype(jnp.int32)].astype(jnp.float32)          # (B,)
    sqrt_a = jnp.repeat(jnp.sqrt(a_t), k).reshape(R, 1)                # (R, 1)
    sqrt_1ma = jnp.repeat(jnp.sqrt(1.0 - a_t), k).reshape(R, 1)        # (R, 1)

    xf = x.reshape(R, N)

    # Pad lanes to a multiple of 128 so the tiled path runs on every shape.
    Npad = ((N + 127) // 128) * 128
    pad = Npad - N
    if pad:
        xf = jnp.pad(xf, ((0, 0), (0, pad)))

    TB, TN = _pick_tiles(R, Npad, itemsize, q)
    grid = (R // TB, Npad // TN)

    # Scales are resident (full-array block, constant index_map -> no per-step DMA).
    scale_spec = pl.BlockSpec((R, 1), lambda i, j: (0, 0))
    data_spec = pl.BlockSpec((TB, TN), lambda i, j: (i, j))
    cparams = pltpu.CompilerParams(
        dimension_semantics=("parallel", "parallel"),
        vmem_limit_bytes=48 * 1024 * 1024)

    if noise is None:
        cost = pl.CostEstimate(
            flops=R * Npad,
            transcendentals=0,
            bytes_accessed=2 * R * Npad * itemsize + R * 4)
        out = pl.pallas_call(
            functools.partial(_scale_only_kernel, tb=TB, nrows=grid[0]),
            out_shape=jax.ShapeDtypeStruct((R, Npad), x.dtype),
            grid_spec=pl.GridSpec(
                grid=grid,
                in_specs=[scale_spec, data_spec],
                out_specs=data_spec),
            compiler_params=cparams,
            cost_estimate=cost,
        )(sqrt_a, xf)
    else:
        nf = noise.reshape(R, N)              # native dtype, no wrapper cast
        if pad:
            nf = jnp.pad(nf, ((0, 0), (0, pad)))
        n_itemsize = jnp.dtype(nf.dtype).itemsize
        cost = pl.CostEstimate(
            flops=3 * R * Npad,
            transcendentals=0,
            bytes_accessed=R * Npad * (2 * itemsize + n_itemsize) + 2 * R * 4)
        out = pl.pallas_call(
            functools.partial(_diffuse_kernel, tb=TB, nrows=grid[0]),
            out_shape=jax.ShapeDtypeStruct((R, Npad), x.dtype),
            grid_spec=pl.GridSpec(
                grid=grid,
                in_specs=[scale_spec, scale_spec, data_spec, data_spec],
                out_specs=data_spec),
            compiler_params=cparams,
            cost_estimate=cost,
        )(sqrt_a, sqrt_1ma, xf, nf)

    if pad:
        out = out[:, :N]
    return out.reshape(orig_shape)


# ------------------------------- test --------------------------------------- #

if __name__ == "__main__":
    key = jax.random.PRNGKey(0)
    k_x, k_n, k_t = jax.random.split(key, 3)

    # Deterministic schedule: linear betas, num_timesteps=1000.
    num_timesteps = 1000
    betas = jnp.linspace(1e-4, 0.02, num_timesteps, dtype=jnp.float32)
    alpha_bar = jnp.cumprod(1.0 - betas)   # precompute once (sampling-loop friendly)

    # Small shapes consistent with the module's (B, C, H, W) convention.
    B, C, H, W = 2, 4, 16, 16
    x = jax.random.normal(k_x, (B, C, H, W), dtype=jnp.float32)
    noise = jax.random.normal(k_n, (B, C, H, W), dtype=jnp.float32)
    t = jax.random.randint(k_t, (B,), 0, num_timesteps, dtype=jnp.int32)

    x_t = jax.block_until_ready(
        diffusion_forward(x, t, alpha_bar=alpha_bar, noise=noise))

    # Pure-JAX reference (mirrors the PyTorch forward exactly).
    a = alpha_bar[t].reshape(B, 1, 1, 1)
    ref = jnp.sqrt(a) * x + jnp.sqrt(1.0 - a) * noise
    assert x_t.shape == x.shape and x_t.dtype == x.dtype
    assert jnp.allclose(x_t, ref, atol=1e-6, rtol=1e-6), "mismatch vs reference"

    # noise=None path (specialized kernel: no zero stream).
    x_t0 = jax.block_until_ready(
        diffusion_forward(x, t, alpha_bar=alpha_bar, noise=None))
    ref0 = jnp.sqrt(a) * x
    assert jnp.allclose(x_t0, ref0, atol=1e-6, rtol=1e-6), "mismatch (noise=None)"

    # bf16 x with native-f32 noise: mixed-dtype streams, single cast on store.
    xb = x.astype(jnp.bfloat16)
    x_tb = jax.block_until_ready(
        diffusion_forward(xb, t, alpha_bar=alpha_bar, noise=noise))
    refb = (jnp.sqrt(a) * xb.astype(jnp.float32)
            + jnp.sqrt(1.0 - a) * noise).astype(jnp.bfloat16)
    assert x_tb.dtype == jnp.bfloat16
    assert jnp.allclose(x_tb.astype(jnp.float32), refb.astype(jnp.float32),
                        atol=3e-2, rtol=3e-2), "mismatch (bf16)"

    # Non-128-divisible feature size exercises the lane-padding path.
    Bo, Co, Ho, Wo = 2, 3, 10, 10
    xo = jax.random.normal(k_x, (Bo, Co, Ho, Wo), dtype=jnp.float32)
    no = jax.random.normal(k_n, (Bo, Co, Ho, Wo), dtype=jnp.float32)
    to = jax.random.randint(k_t, (Bo,), 0, num_timesteps, dtype=jnp.int32)
    xto = jax.block_until_ready(
        diffusion_forward(xo, to, alpha_bar=alpha_bar, noise=no))
    ao = alpha_bar[to].reshape(Bo, 1, 1, 1)
    refo = jnp.sqrt(ao) * xo + jnp.sqrt(1.0 - ao) * no
    assert jnp.allclose(xto, refo, atol=1e-6, rtol=1e-6), "mismatch (padded lanes)"

    # Larger batch (no folding needed) exercising full-sublane row tiling.
    B2, C2, H2, W2 = 16, 3, 32, 32
    x2 = jax.random.normal(k_x, (B2, C2, H2, W2), dtype=jnp.float32)
    n2 = jax.random.normal(k_n, (B2, C2, H2, W2), dtype=jnp.float32)
    t2 = jax.random.randint(k_t, (B2,), 0, num_timesteps, dtype=jnp.int32)
    xt2 = jax.block_until_ready(diffusion_forward(x2, t2, betas=betas, noise=n2))
    a2 = alpha_bar[t2].reshape(B2, 1, 1, 1)
    ref2 = jnp.sqrt(a2) * x2 + jnp.sqrt(1.0 - a2) * n2
    assert jnp.allclose(xt2, ref2, atol=1e-6, rtol=1e-6), "mismatch (tiled path)"

    print("KERNEL_OK")
</pallas_src>

<mosaic_0001>
module attributes {stable_mosaic.version = 11 : i64} {
  func.func @_diffuse_kernel(%arg0: i32, %arg1: i32, %arg2: memref<8x1xf32, #tpu.memory_space<vmem>>, %arg3: memref<8x1xf32, #tpu.memory_space<vmem>>, %arg4: memref<8x256xf32, #tpu.memory_space<vmem>>, %arg5: memref<8x256xf32, #tpu.memory_space<vmem>>, %arg6: memref<8x256xf32, #tpu.memory_space<vmem>>) attributes {dimension_semantics = [#tpu.dimension_semantics<parallel>, #tpu.dimension_semantics<parallel>], iteration_bounds = array<i64: 1, 1>, scalar_prefetch = 0 : i64, scratch_operands = 0 : i64, tpu.core_type = #tpu.core_type<tc>, window_params = [{pipeline_mode = #tpu.pipeline_mode<synchronous>, transform_indices = @transform_0, window_bounds = array<i64: 8, 1>}, {pipeline_mode = #tpu.pipeline_mode<synchronous>, transform_indices = @transform_1, window_bounds = array<i64: 8, 1>}, {transform_indices = @transform_2, window_bounds = array<i64: 8, 256>}, {transform_indices = @transform_3, window_bounds = array<i64: 8, 256>}, {transform_indices = @transform_4, window_bounds = array<i64: 8, 256>}]} {
    %c0 = arith.constant 0 : index
    %c0_0 = arith.constant 0 : index
    %0 = vector.load %arg2[%c0, %c0_0] : memref<8x1xf32, #tpu.memory_space<vmem>>, vector<8x1xf32>
    %c0_1 = arith.constant 0 : index
    %c0_2 = arith.constant 0 : index
    %1 = vector.load %arg3[%c0_1, %c0_2] : memref<8x1xf32, #tpu.memory_space<vmem>>, vector<8x1xf32>
    %c0_3 = arith.constant 0 : index
    %c0_4 = arith.constant 0 : index
    %2 = vector.load %arg4[%c0_3, %c0_4] : memref<8x256xf32, #tpu.memory_space<vmem>>, vector<8x256xf32>
    %3 = vector.broadcast %0 : vector<8x1xf32> to vector<8x256xf32>
    %4 = arith.mulf %3, %2 : vector<8x256xf32>
    %c0_5 = arith.constant 0 : index
    %c0_6 = arith.constant 0 : index
    %5 = vector.load %arg5[%c0_5, %c0_6] : memref<8x256xf32, #tpu.memory_space<vmem>>, vector<8x256xf32>
    %6 = vector.broadcast %1 : vector<8x1xf32> to vector<8x256xf32>
    %7 = arith.mulf %6, %5 : vector<8x256xf32>
    %8 = arith.addf %4, %7 : vector<8x256xf32>
    %c0_7 = arith.constant 0 : index
    %c0_8 = arith.constant 0 : index
    %9 = vector.load %arg6[%c0_7, %c0_8] : memref<8x256xf32, #tpu.memory_space<vmem>>, vector<8x256xf32>
    tpu.vector_store %arg6[%c0_7, %c0_8], %8 {strides = array<i32>} : memref<8x256xf32, #tpu.memory_space<vmem>>, vector<8x256xf32>,
    return
  }
  func.func @transform_0(%arg0: i32, %arg1: i32) -> (i32, i32) {
    %c0_i32 = arith.constant 0 : i32
    %c0_i32_0 = arith.constant 0 : i32
    %c0_i32_1 = arith.constant 0 : i32
    return %c0_i32, %c0_i32_0 : i32, i32
  }
  func.func @transform_1(%arg0: i32, %arg1: i32) -> (i32, i32) {
    %c0_i32 = arith.constant 0 : i32
    %c0_i32_0 = arith.constant 0 : i32
    %c0_i32_1 = arith.constant 0 : i32
    return %c0_i32, %c0_i32_0 : i32, i32
  }
  func.func @transform_2(%arg0: i32, %arg1: i32) -> (i32, i32) {
    %c0_i32 = arith.constant 0 : i32
    return %arg0, %arg1 : i32, i32
  }
  func.func @transform_3(%arg0: i32, %arg1: i32) -> (i32, i32) {
    %c0_i32 = arith.constant 0 : i32
    return %arg0, %arg1 : i32, i32
  }
  func.func @transform_4(%arg0: i32, %arg1: i32) -> (i32, i32) {
    %c0_i32 = arith.constant 0 : i32
    return %arg0, %arg1 : i32, i32
  }
}

</mosaic_0001>

<llo_original>
// kernel: tpu_custom_call.1
$region0: #{tpu_custom_call.1}
  #allocation0 [shape = 'u32[]', space=smem, size = 0x4, offset = 0x4, fixed_abs, tag = 'smem constant byte address 0x4 - core index']
  #allocation1 [shape = 'u32[144,128]{1,0:T(1,128)}', space=vmem, size = 0x12000, scoped, tag = 'internal scratch']
  %s0 = inlined_call_operand.vmem [shape: f32[8,1], index: 0, kind: input, shape index: {}]
  %s1 = inlined_call_operand.vmem [shape: f32[8,1], index: 1, kind: input, shape index: {}]
  %s2 = inlined_call_operand.vmem [shape: f32[8,256], index: 2, kind: input, shape index: {}]
  %s3 = inlined_call_operand.hbm [shape: f32[8,256], index: 3, kind: input, shape index: {}]
  %s4 = inlined_call_operand.hbm [shape: f32[8,256], index: 4, kind: output, shape index: {}]
  %s5 = sld [smem:[#allocation0]]
  $region30: #{tpu_custom_call.1} parent=0
    _
  %s7 = ssub.s32 1, %s5
  %s8 = scalar_select 0, %s7, %s5
  $region1: #{tpu_custom_call.1} parent=0
    #allocation2 [shape = 'u8[8192]{0}', space=vmem, size = 0x2000, scoped, tag = 'input window, operand 3, single buffered']
    #allocation3 [shape = 's32[1]{0}', space=sflag, size = 0x4, scoped, tag = 'scoped memory for tpu_custom_call.1']
    #allocation4 [shape = 's32[1]{0}', space=sflag, size = 0x4, scoped, tag = 'scoped memory for tpu_custom_call.1']
    #allocation5 [shape = 'u8[8192]{0}', space=vmem, size = 0x2000, scoped, tag = 'output window, operand 0, single buffered']
    %9 = vsyncpa [#allocation3], 0
    %10 = vsyncpa [#allocation4], 0
    // Predicated region
    $region2: #{tpu_custom_call.1} parent=1 // pred_check
      _
    $region3: #{tpu_custom_call.1} parent=1 // pred_check_branch
      %12 = sbr.rel (0) target = $region5
    $region4: #{tpu_custom_call.1} parent=1 // pred_region
      _
    $region5: #{tpu_custom_call.1} parent=1 // pred_fallthru
      _
    // Predicated region
    $region6: #{tpu_custom_call.1} parent=1 // pred_check
      _
    $region7: #{tpu_custom_call.1} parent=1 // pred_check_branch
      %14 = sbr.rel (0) target = $region9
    $region8: #{tpu_custom_call.1} parent=1 // pred_region
      _
    $region9: #{tpu_custom_call.1} parent=1 // pred_fallthru
      _
    // Predicated region
    $region10: #{tpu_custom_call.1} parent=1 // pred_check
      _
    $region11: #{tpu_custom_call.1} parent=1 // pred_check_branch
      %16 = sbr.rel (0) target = $region13
    $region12: #{tpu_custom_call.1} parent=1 // pred_region
      _
    $region13: #{tpu_custom_call.1} parent=1 // pred_fallthru
      _
    // Predicated region
    $region14: #{tpu_custom_call.1} parent=1 // pred_check
      _
    $region15: #{tpu_custom_call.1} parent=1 // pred_check_branch
      %18 = sbr.rel (0) target = $region17
    $region16: #{tpu_custom_call.1} parent=1 // pred_region
      %s20 = ssub.s32 256, 256
      %21 = vsyncadd [#allocation3], %s20
      %s23 = sshll.u32 [#allocation2], 4
      %s24 = int_to_ptr.vmem [resolvable:$true] %s23
      %26 = dma.hbm_to_vmem [thread:$0]  %s3, 256, %s24, [#allocation3]
    $region17: #{tpu_custom_call.1} parent=1 // pred_fallthru
      _
    // Predicated region
    $region18: #{tpu_custom_call.1} parent=1 // pred_check
      _
    $region19: #{tpu_custom_call.1} parent=1 // pred_check_branch
      %28 = sbr.rel (0) target = $region21
    $region20: #{tpu_custom_call.1} parent=1 // pred_region
      %29 = dma.done [#allocation3], 256
    $region21: #{tpu_custom_call.1} parent=1 // pred_fallthru
      _
    %v30 = vld [vmem:[%s0] sm:$0xff]
    %v31 = vld [vmem:[%s1] sm:$0xff]
    %v32 = vld [vmem:[%s2] sm:$0xff]
    %v33 = vld [vmem:[%s2 + $0x8] sm:$0xff]
    %35 = vset.pattern.permute.xlu0 0
    %36 = vperm.xlu0 %35, %v30
    %v37 = vpop.permute.xlu0 %36
    %v39 = vmul.f32 %v37, %v32
    %v40 = vmul.f32 %v37, %v33
    %v41 = vld [vmem:[#allocation2] sm:$0xff]
    %v42 = vld [vmem:[#allocation2 + $0x8] sm:$0xff]
    %44 = vset.pattern.permute.xlu0 0
    %45 = vperm.xlu0 %44, %v31
    %v46 = vpop.permute.xlu0 %45
    %v48 = vmul.f32 %v46, %v41
    %v49 = vmul.f32 %v46, %v42
    %v50 = vadd.f32 %v39, %v48
    %v51 = vadd.f32 %v40, %v49
    %52 = vst [vmem:[#allocation5] sm:$0xff] %v50
    %53 = vst [vmem:[#allocation5 + $0x8] sm:$0xff] %v51
    // Predicated region
    $region22: #{tpu_custom_call.1} parent=1 // pred_check
      _
    $region23: #{tpu_custom_call.1} parent=1 // pred_check_branch
      %55 = sbr.rel (0) target = $region25
    $region24: #{tpu_custom_call.1} parent=1 // pred_region
      %s57 = ssub.s32 256, 256
      %58 = vsyncadd [#allocation4], %s57
      %s60 = sshll.u32 [#allocation5], 4
      %s61 = int_to_ptr.vmem [resolvable:$true] %s60
      %63 = dma.vmem_to_hbm [thread:$0]  %s61, 256, %s4, [#allocation4]
    $region25: #{tpu_custom_call.1} parent=1 // pred_fallthru
      _
    // Predicated region
    $region26: #{tpu_custom_call.1} parent=1 // pred_check
      _
    $region27: #{tpu_custom_call.1} parent=1 // pred_check_branch
      %65 = sbr.rel (0) target = $region29
    $region28: #{tpu_custom_call.1} parent=1 // pred_region
      %66 = dma.done [#allocation4], 256
    $region29: #{tpu_custom_call.1} parent=1 // pred_fallthru
      _
    %67 = vsyncpa [#allocation3], 1
    %68 = vsyncpa [#allocation4], 1

</llo_original>
